<compile_context>
chip_gen: v7x
topology: tpu7x:2x2x1
jax: 0.10.0
libtpu: 0.0.40
codegen_flags: <defaults>
</compile_context>

<pallas_src>
import numpy as np
import jax
import jax.numpy as jnp
from jax.experimental import pallas as pl
from jax.experimental.pallas import tpu as pltpu

IN_DIM = 5        # state dimension
HID = 128         # hidden width
ACT = 5           # number of actions
VAL = 1           # value head width
LANE = 128        # lane width of the packed output
XPAD = 8          # padded input feature width (5 features + 1 ones + 2 zero)
SUB = 8           # sublane granularity for the batch axis
VAL_LANE = 8      # lane of the packed output holding the state value
MAX_TILE_B = 512  # batch rows per grid step (fits comfortably in VMEM on
                  # v5e/v6e/v7x)


def policy_kernel(x_ref, w1_ref, wh_ref, bh_ref, mask_ref, sel_ref, out_ref):
    # trunk: relu(x_aug @ W1_aug)   (bias folded into W1 via ones column of x)
    h = jnp.maximum(
        jnp.dot(x_ref[...], w1_ref[...], preferred_element_type=jnp.float32),
        0.0)                                                        # (TB, 128)

    # fused (pre-composed) heads:
    #   lanes 0..4 -> actor logits, lane 8 -> state value, rest -> 0
    y = jnp.dot(h, wh_ref[...],
                preferred_element_type=jnp.float32) + bh_ref[...]   # (TB, 128)

    # masked softmax over the 5 real action lanes (mask = -1e30 elsewhere,
    # including the value lane, so those lanes contribute exactly 0)
    logits = y + mask_ref[...]
    m = jnp.max(logits, axis=-1, keepdims=True)
    e = jnp.exp(logits - m)
    s = jnp.sum(e, axis=-1, keepdims=True)
    prob = e * pl.reciprocal(s, approx=False)

    # pack: prob in lanes 0..4 (prob is exactly 0 on masked lanes),
    #       value in lane 8 via the selector constant.
    out_ref[...] = prob + sel_ref[...] * y


def init_params(key):
    """PyTorch-Linear-style deterministic init: U(-1/sqrt(fan_in), +1/sqrt(fan_in))."""
    def linear(key, fan_in, fan_out):
        kw, kb = jax.random.split(key)
        bound = 1.0 / np.sqrt(fan_in)
        w = jax.random.uniform(kw, (fan_in, fan_out), jnp.float32, -bound, bound)
        b = jax.random.uniform(kb, (fan_out,), jnp.float32, -bound, bound)
        return w, b

    keys = jax.random.split(key, 5)
    w1, b1 = linear(keys[0], IN_DIM, HID)
    wa1, ba1 = linear(keys[1], HID, HID)
    wa2, ba2 = linear(keys[2], HID, ACT)
    wv1, bv1 = linear(keys[3], HID, HID)
    wv2, bv2 = linear(keys[4], HID, VAL)
    return dict(w1=w1, b1=b1, wa1=wa1, ba1=ba1, wa2=wa2, ba2=ba2,
                wv1=wv1, bv1=bv1, wv2=wv2, bv2=bv2)


def prepare_params(p):
    """One-time host-side fusion/padding of the weights into kernel layout.

    The head compositions are done in float64 so the only reassociation error
    vs. the two-matmul reference is the final f32 rounding (well below 1e-5).
    """
    pn = {k: np.asarray(v, np.float64) for k, v in p.items()}

    # trunk weight with the bias folded in (row IN_DIM multiplies the ones col)
    w1 = np.zeros((XPAD, HID), np.float64)
    w1[:IN_DIM, :] = pn["w1"]
    w1[IN_DIM, :] = pn["b1"]

    # composed heads packed into one (128, 128) weight / (1, 128) bias
    wh = np.zeros((HID, LANE), np.float64)
    bh = np.zeros((1, LANE), np.float64)
    wh[:, :ACT] = pn["wa1"] @ pn["wa2"]
    bh[0, :ACT] = pn["ba1"] @ pn["wa2"] + pn["ba2"]
    wh[:, VAL_LANE:VAL_LANE + VAL] = pn["wv1"] @ pn["wv2"]
    bh[0, VAL_LANE:VAL_LANE + VAL] = pn["bv1"] @ pn["wv2"] + pn["bv2"]

    # softmax mask (0 on real action lanes, -1e30 elsewhere) and value selector
    lane = np.arange(LANE)
    mask = np.where(lane < ACT, 0.0, -1e30).reshape(1, LANE)
    sel = (lane == VAL_LANE).astype(np.float64).reshape(1, LANE)

    cast = lambda a: jnp.asarray(a, dtype=jnp.float32)
    return dict(w1=cast(w1), wh=cast(wh), bh=cast(bh),
                mask=cast(mask), sel=cast(sel))


def policy_forward(x, prep):
    # TODO(synk): for v5e, casting activations/weights to bf16 (f32 accumulate)
    # would be several-x faster but exceeds the 1e-5 tolerance used here.
    B = x.shape[0]
    Bp8 = ((B + SUB - 1) // SUB) * SUB
    tile_b = min(MAX_TILE_B, Bp8)
    Bp = ((B + tile_b - 1) // tile_b) * tile_b
    grid = (Bp // tile_b,)

    # only per-call prep: append ones column (folded trunk bias), pad to (Bp, 8)
    ones = jnp.ones((B, 1), jnp.float32)
    x_p = jnp.pad(jnp.concatenate([x.astype(jnp.float32), ones], axis=1),
                  ((0, Bp - B), (0, XPAD - (IN_DIM + 1))))

    rep = lambda i: (0, 0)   # weights/consts: same block every step (fetched once)
    out = pl.pallas_call(
        policy_kernel,
        out_shape=jax.ShapeDtypeStruct((Bp, LANE), jnp.float32),
        grid=grid,
        in_specs=[
            pl.BlockSpec((tile_b, XPAD), lambda i: (i, 0)),   # x (+ones col)
            pl.BlockSpec((XPAD, HID), rep),                   # trunk W (+bias row)
            pl.BlockSpec((HID, LANE), rep),                   # composed heads W
            pl.BlockSpec((1, LANE), rep),                     # composed heads b
            pl.BlockSpec((1, LANE), rep),                     # softmax mask
            pl.BlockSpec((1, LANE), rep),                     # value selector
        ],
        out_specs=pl.BlockSpec((tile_b, LANE), lambda i: (i, 0)),
        compiler_params=pltpu.CompilerParams(
            dimension_semantics=("parallel",)),
    )(x_p, prep["w1"], prep["wh"], prep["bh"], prep["mask"], prep["sel"])

    action_prob = out[:B, :ACT]
    state_values = out[:B, VAL_LANE:VAL_LANE + VAL]
    return action_prob, state_values


def policy_forward_ref(x, p):
    """Pure-JAX reference mirroring the PyTorch forward."""
    h = jax.nn.relu(x @ p["w1"] + p["b1"])
    xa = h @ p["wa1"] + p["ba1"]
    logits = xa @ p["wa2"] + p["ba2"]
    action_prob = jax.nn.softmax(logits, axis=-1)
    xc = h @ p["wv1"] + p["bv1"]
    state_values = xc @ p["wv2"] + p["bv2"]
    return action_prob, state_values


if __name__ == "__main__":
    key = jax.random.PRNGKey(0)
    k_params, k_x = jax.random.split(key)

    params = init_params(k_params)
    prep = prepare_params(params)          # one-time weight fusion/padding

    B = 8
    x = jax.random.normal(k_x, (B, IN_DIM), jnp.float32)

    fwd = jax.jit(policy_forward)
    action_prob, state_values = fwd(x, prep)
    jax.block_until_ready((action_prob, state_values))

    ref_prob, ref_val = policy_forward_ref(x, params)
    np.testing.assert_allclose(np.asarray(action_prob), np.asarray(ref_prob),
                               rtol=1e-5, atol=1e-5)
    np.testing.assert_allclose(np.asarray(state_values), np.asarray(ref_val),
                               rtol=1e-5, atol=1e-5)
    assert action_prob.shape == (B, ACT) and state_values.shape == (B, VAL)
    assert np.allclose(np.asarray(action_prob).sum(-1), 1.0, atol=1e-5)

    print("KERNEL_OK")
</pallas_src>

<mosaic_0001>
module attributes {stable_mosaic.version = 11 : i64} {
  func.func @policy_kernel(%arg0: i32, %arg1: memref<8x8xf32, #tpu.memory_space<vmem>>, %arg2: memref<8x128xf32, #tpu.memory_space<vmem>>, %arg3: memref<128x128xf32, #tpu.memory_space<vmem>>, %arg4: memref<1x128xf32, #tpu.memory_space<vmem>>, %arg5: memref<1x128xf32, #tpu.memory_space<vmem>>, %arg6: memref<1x128xf32, #tpu.memory_space<vmem>>, %arg7: memref<8x128xf32, #tpu.memory_space<vmem>>) attributes {dimension_semantics = [#tpu.dimension_semantics<parallel>], iteration_bounds = array<i64: 1>, scalar_prefetch = 0 : i64, scratch_operands = 0 : i64, tpu.core_type = #tpu.core_type<tc>, window_params = [{transform_indices = @transform_0, window_bounds = array<i64: 8, 8>}, {pipeline_mode = #tpu.pipeline_mode<synchronous>, transform_indices = @transform_1, window_bounds = array<i64: 8, 128>}, {pipeline_mode = #tpu.pipeline_mode<synchronous>, transform_indices = @transform_2, window_bounds = array<i64: 128, 128>}, {pipeline_mode = #tpu.pipeline_mode<synchronous>, transform_indices = @transform_3, window_bounds = array<i64: 1, 128>}, {pipeline_mode = #tpu.pipeline_mode<synchronous>, transform_indices = @transform_4, window_bounds = array<i64: 1, 128>}, {pipeline_mode = #tpu.pipeline_mode<synchronous>, transform_indices = @transform_5, window_bounds = array<i64: 1, 128>}, {transform_indices = @transform_6, window_bounds = array<i64: 8, 128>}]} {
    %c0 = arith.constant 0 : index
    %c0_0 = arith.constant 0 : index
    %0 = vector.load %arg1[%c0, %c0_0] : memref<8x8xf32, #tpu.memory_space<vmem>>, vector<8x8xf32>
    %c0_1 = arith.constant 0 : index
    %c0_2 = arith.constant 0 : index
    %1 = vector.load %arg2[%c0_1, %c0_2] : memref<8x128xf32, #tpu.memory_space<vmem>>, vector<8x128xf32>
    %cst = arith.constant dense<0.000000e+00> : vector<8x128xf32>
    %2 = tpu.matmul %0, %1, %cst {dimension_numbers = #tpu.dot_dimension_numbers<[1], [0], [0], [1], [0, 0, 1, 1], [], []>} : vector<8x8xf32>, vector<8x128xf32>, vector<8x128xf32> -> vector<8x128xf32>
    %cst_3 = arith.constant 0.000000e+00 : f32
    %3 = vector.broadcast %cst_3 : f32 to vector<8x128xf32>
    %4 = arith.maximumf %2, %3 : vector<8x128xf32>
    %c0_4 = arith.constant 0 : index
    %c0_5 = arith.constant 0 : index
    %5 = vector.load %arg3[%c0_4, %c0_5] : memref<128x128xf32, #tpu.memory_space<vmem>>, vector<128x128xf32>
    %cst_6 = arith.constant dense<0.000000e+00> : vector<8x128xf32>
    %6 = tpu.matmul %4, %5, %cst_6 {dimension_numbers = #tpu.dot_dimension_numbers<[1], [0], [0], [1], [0, 0, 1, 1], [], []>} : vector<8x128xf32>, vector<128x128xf32>, vector<8x128xf32> -> vector<8x128xf32>
    %c0_7 = arith.constant 0 : index
    %c0_8 = arith.constant 0 : index
    %7 = vector.load %arg4[%c0_7, %c0_8] : memref<1x128xf32, #tpu.memory_space<vmem>>, vector<1x128xf32>
    %8 = vector.broadcast %7 : vector<1x128xf32> to vector<8x128xf32>
    %9 = arith.addf %6, %8 : vector<8x128xf32>
    %c0_9 = arith.constant 0 : index
    %c0_10 = arith.constant 0 : index
    %10 = vector.load %arg5[%c0_9, %c0_10] : memref<1x128xf32, #tpu.memory_space<vmem>>, vector<1x128xf32>
    %11 = vector.broadcast %10 : vector<1x128xf32> to vector<8x128xf32>
    %12 = arith.addf %9, %11 : vector<8x128xf32>
    %cst_11 = arith.constant dense<0xFF800000> : vector<8xf32>
    %13 = vector.multi_reduction <maximumf>, %12, %cst_11 [1] : vector<8x128xf32> to vector<8xf32>
    %14 = vector.shape_cast %13 : vector<8xf32> to vector<8x1xf32>
    %15 = vector.broadcast %14 : vector<8x1xf32> to vector<8x128xf32>
    %16 = arith.subf %12, %15 : vector<8x128xf32>
    %17 = math.exp %16 : vector<8x128xf32>
    %cst_12 = arith.constant dense<0.000000e+00> : vector<8xf32>
    %18 = vector.multi_reduction <add>, %17, %cst_12 [1] : vector<8x128xf32> to vector<8xf32>
    %19 = vector.shape_cast %18 : vector<8xf32> to vector<8x1xf32>
    %20 = tpu.reciprocal %19 : vector<8x1xf32> -> vector<8x1xf32>
    %21 = vector.broadcast %20 : vector<8x1xf32> to vector<8x128xf32>
    %22 = arith.mulf %17, %21 : vector<8x128xf32>
    %c0_13 = arith.constant 0 : index
    %c0_14 = arith.constant 0 : index
    %23 = vector.load %arg6[%c0_13, %c0_14] : memref<1x128xf32, #tpu.memory_space<vmem>>, vector<1x128xf32>
    %24 = vector.broadcast %23 : vector<1x128xf32> to vector<8x128xf32>
    %25 = arith.mulf %24, %9 : vector<8x128xf32>
    %26 = arith.addf %22, %25 : vector<8x128xf32>
    %c0_15 = arith.constant 0 : index
    %c0_16 = arith.constant 0 : index
    %27 = vector.load %arg7[%c0_15, %c0_16] : memref<8x128xf32, #tpu.memory_space<vmem>>, vector<8x128xf32>
    tpu.vector_store %arg7[%c0_15, %c0_16], %26 {strides = array<i32>} : memref<8x128xf32, #tpu.memory_space<vmem>>, vector<8x128xf32>,
    return
  }
  func.func @transform_0(%arg0: i32) -> (i32, i32) {
    %c0_i32 = arith.constant 0 : i32
    %c0_i32_0 = arith.constant 0 : i32
    return %arg0, %c0_i32 : i32, i32
  }
  func.func @transform_1(%arg0: i32) -> (i32, i32) {
    %c0_i32 = arith.constant 0 : i32
    %c0_i32_0 = arith.constant 0 : i32
    %c0_i32_1 = arith.constant 0 : i32
    return %c0_i32, %c0_i32_0 : i32, i32
  }
  func.func @transform_2(%arg0: i32) -> (i32, i32) {
    %c0_i32 = arith.constant 0 : i32
    %c0_i32_0 = arith.constant 0 : i32
    %c0_i32_1 = arith.constant 0 : i32
    return %c0_i32, %c0_i32_0 : i32, i32
  }
  func.func @transform_3(%arg0: i32) -> (i32, i32) {
    %c0_i32 = arith.constant 0 : i32
    %c0_i32_0 = arith.constant 0 : i32
    %c0_i32_1 = arith.constant 0 : i32
    return %c0_i32, %c0_i32_0 : i32, i32
  }
  func.func @transform_4(%arg0: i32) -> (i32, i32) {
    %c0_i32 = arith.constant 0 : i32
    %c0_i32_0 = arith.constant 0 : i32
    %c0_i32_1 = arith.constant 0 : i32
    return %c0_i32, %c0_i32_0 : i32, i32
  }
  func.func @transform_5(%arg0: i32) -> (i32, i32) {
    %c0_i32 = arith.constant 0 : i32
    %c0_i32_0 = arith.constant 0 : i32
    %c0_i32_1 = arith.constant 0 : i32
    return %c0_i32, %c0_i32_0 : i32, i32
  }
  func.func @transform_6(%arg0: i32) -> (i32, i32) {
    %c0_i32 = arith.constant 0 : i32
    %c0_i32_0 = arith.constant 0 : i32
    return %arg0, %c0_i32 : i32, i32
  }
}

</mosaic_0001>

<llo_original>
// kernel: policy_forward.1
$region0: #{policy_forward.1}
  #allocation0 [shape = 'u32[]', space=smem, size = 0x4, offset = 0x4, fixed_abs, tag = 'smem constant byte address 0x4 - core index']
  #allocation1 [shape = 'u32[144,128]{1,0:T(1,128)}', space=vmem, size = 0x12000, scoped, tag = 'internal scratch']
  %s0 = inlined_call_operand.vmem [shape: f32[8,8], index: 0, kind: input, shape index: {}]
  %s1 = inlined_call_operand.vmem [shape: f32[8,128], index: 1, kind: input, shape index: {}]
  %s2 = inlined_call_operand.hbm [shape: f32[128,128], index: 2, kind: input, shape index: {}]
  %s3 = inlined_call_operand.vmem [shape: f32[1,128], index: 3, kind: input, shape index: {}]
  %s4 = inlined_call_operand.vmem [shape: f32[1,128], index: 4, kind: input, shape index: {}]
  %s5 = inlined_call_operand.vmem [shape: f32[1,128], index: 5, kind: input, shape index: {}]
  %s6 = inlined_call_operand.vmem [shape: f32[8,128], index: 6, kind: output, shape index: {}]
  %s7 = sld [smem:[#allocation0]]
  $region38: #{policy_forward.1} parent=0
    _
  %s9 = ssub.s32 1, %s7
  %s10 = scalar_select 0, %s9, %s7
  $region1: #{policy_forward.1} parent=0
    #allocation2 [shape = 'u8[65536]{0}', space=vmem, size = 0x10000, scoped, tag = 'input window, operand 2, single buffered']
    #allocation3 [shape = 's32[1]{0}', space=sflag, size = 0x4, scoped, tag = 'scoped memory for policy_forward.1']
    %11 = vsyncpa [#allocation3], 0
    // Predicated region
    $region2: #{policy_forward.1} parent=1 // pred_check
      _
    $region3: #{policy_forward.1} parent=1 // pred_check_branch
      %13 = sbr.rel (0) target = $region5
    $region4: #{policy_forward.1} parent=1 // pred_region
      _
    $region5: #{policy_forward.1} parent=1 // pred_fallthru
      _
    // Predicated region
    $region6: #{policy_forward.1} parent=1 // pred_check
      _
    $region7: #{policy_forward.1} parent=1 // pred_check_branch
      %15 = sbr.rel (0) target = $region9
    $region8: #{policy_forward.1} parent=1 // pred_region
      _
    $region9: #{policy_forward.1} parent=1 // pred_fallthru
      _
    // Predicated region
    $region10: #{policy_forward.1} parent=1 // pred_check
      _
    $region11: #{policy_forward.1} parent=1 // pred_check_branch
      %17 = sbr.rel (0) target = $region13
    $region12: #{policy_forward.1} parent=1 // pred_region
      %s19 = ssub.s32 2048, 2048
      %20 = vsyncadd [#allocation3], %s19
      %s21 = sshll.u32 [#allocation2], 4
      %s22 = int_to_ptr.vmem [resolvable:$true] %s21
      %27 = dma.hbm_to_vmem [thread:$0]  %s2, 2048, %s22, [#allocation3], 128, 128, 8
    $region13: #{policy_forward.1} parent=1 // pred_fallthru
      _
    // Predicated region
    $region14: #{policy_forward.1} parent=1 // pred_check
      _
    $region15: #{policy_forward.1} parent=1 // pred_check_branch
      %29 = sbr.rel (0) target = $region17
    $region16: #{policy_forward.1} parent=1 // pred_region
      _
    $region17: #{policy_forward.1} parent=1 // pred_fallthru
      _
    // Predicated region
    $region18: #{policy_forward.1} parent=1 // pred_check
      _
    $region19: #{policy_forward.1} parent=1 // pred_check_branch
      %31 = sbr.rel (0) target = $region21
    $region20: #{policy_forward.1} parent=1 // pred_region
      _
    $region21: #{policy_forward.1} parent=1 // pred_fallthru
      _
    // Predicated region
    $region22: #{policy_forward.1} parent=1 // pred_check
      _
    $region23: #{policy_forward.1} parent=1 // pred_check_branch
      %33 = sbr.rel (0) target = $region25
    $region24: #{policy_forward.1} parent=1 // pred_region
      _
    $region25: #{policy_forward.1} parent=1 // pred_fallthru
      _
    // Predicated region
    $region26: #{policy_forward.1} parent=1 // pred_check
      _
    $region27: #{policy_forward.1} parent=1 // pred_check_branch
      %35 = sbr.rel (0) target = $region29
    $region28: #{policy_forward.1} parent=1 // pred_region
      %36 = dma.done [#allocation3], 2048
    $region29: #{policy_forward.1} parent=1 // pred_fallthru
      _
    %v37 = vld [vmem:[%s0] sm:$0xff]
    %v38 = vld [vmem:[%s1] sm:$0xff]
    %vm39 = vcmask 64512
    %v41 = vsel %vm39, %v37, 0
    %43 = vmatprep.subr.mxu0 0.0
    %44 = vmatpush1.msra.mxu0 %v38
    %45 = vmatprep.subr.mxu0 0.0
    %46 = vmatpush1.msra.mxu0 0.0
    %47 = vmatprep.subr.mxu0 0.0
    %48 = vmatpush1.msra.mxu0 0.0
    %49 = vmatprep.subr.mxu0 0.0
    %50 = vmatpush1.msra.mxu0 0.0
    %51 = vmatprep.subr.mxu0 0.0
    %52 = vmatpush1.msra.mxu0 0.0
    %53 = vmatprep.subr.mxu0 0.0
    %54 = vmatpush1.msra.mxu0 0.0
    %55 = vmatprep.subr.mxu0 0.0
    %56 = vmatpush1.msra.mxu0 0.0
    %57 = vmatprep.subr.mxu0 0.0
    %58 = vmatpush1.msra.mxu0 0.0
    %59 = vmatprep.subr.mxu0 0.0
    %60 = vmatpush1.msra.mxu0 0.0
    %61 = vmatprep.subr.mxu0 0.0
    %62 = vmatpush1.msra.mxu0 0.0
    %63 = vmatprep.subr.mxu0 0.0
    %64 = vmatpush1.msra.mxu0 0.0
    %65 = vmatprep.subr.mxu0 0.0
    %66 = vmatpush1.msra.mxu0 0.0
    %67 = vmatprep.subr.mxu0 0.0
    %68 = vmatpush1.msra.mxu0 0.0
    %69 = vmatprep.subr.mxu0 0.0
    %70 = vmatpush1.msra.mxu0 0.0
    %71 = vmatprep.subr.mxu0 0.0
    %72 = vmatpush1.msra.mxu0 0.0
    %73 = vmatprep.subr.mxu0 0.0
    %74 = vmatpush1.msra.mxu0 0.0
    %75 = vmatprep.subr.mxu0 0.0
    %76 = vmatpush1.msra.mxu0 0.0
    %77 = vmatprep.subr.mxu0 0.0
    %78 = vmatpush1.msra.mxu0 0.0
    %79 = vmatprep.subr.mxu0 0.0
    %80 = vmatpush1.msra.mxu0 0.0
    %81 = vmatprep.subr.mxu0 0.0
    %82 = vmatpush1.msra.mxu0 0.0
    %83 = vmatprep.subr.mxu0 0.0
    %84 = vmatpush1.msra.mxu0 0.0
    %85 = vmatprep.subr.mxu0 0.0
    %86 = vmatpush1.msra.mxu0 0.0
    %87 = vmatprep.subr.mxu0 0.0
    %88 = vmatpush1.msra.mxu0 0.0
    %89 = vmatprep.subr.mxu0 0.0
    %90 = vmatpush1.msra.mxu0 0.0
    %91 = vmatprep.subr.mxu0 0.0
    %92 = vmatpush1.msra.mxu0 0.0
    %93 = vmatprep.subr.mxu0 0.0
    %94 = vmatpush1.msra.mxu0 0.0
    %95 = vmatprep.subr.mxu0 0.0
    %96 = vmatpush1.msra.mxu0 0.0
    %97 = vmatprep.subr.mxu0 0.0
    %98 = vmatpush1.msra.mxu0 0.0
    %99 = vmatprep.subr.mxu0 0.0
    %100 = vmatpush1.msra.mxu0 0.0
    %101 = vmatprep.subr.mxu0 0.0
    %102 = vmatpush1.msra.mxu0 0.0
    %103 = vmatprep.subr.mxu0 0.0
    %104 = vmatpush1.msra.mxu0 0.0
    %105 = vmatprep.subr.mxu0 0.0
    %106 = vmatpush1.msra.mxu0 0.0
    %107 = vmatprep.mubr.f32.mxu0 0.0
    %108 = vmatmul.mubr.f32.gmra.mrb[0].mxu0 %v41
    %v109 = vpop.f32.mrb[0].mxu0
    %v110 = vadd.f32 0.0, %v109
    %v111 = vpop.f32.mrb[0].mxu0
    %112 = vdwg.mxu0
    %v113 = vmax.f32 %v110, 0.0
    %v114 = vld [vmem:[#allocation2] sm:$0xff]
    %v115 = vld [vmem:[#allocation2 + $0x8] sm:$0xff]
    %v116 = vld [vmem:[#allocation2 + $0x10] sm:$0xff]
    %v117 = vld [vmem:[#allocation2 + $0x18] sm:$0xff]
    %v118 = vld [vmem:[#allocation2 + $0x20] sm:$0xff]
    %v119 = vld [vmem:[#allocation2 + $0x28] sm:$0xff]
    %v120 = vld [vmem:[#allocation2 + $0x30] sm:$0xff]
    %v121 = vld [vmem:[#allocation2 + $0x38] sm:$0xff]
    %v122 = vld [vmem:[#allocation2 + $0x40] sm:$0xff]
    %v123 = vld [vmem:[#allocation2 + $0x48] sm:$0xff]
    %v124 = vld [vmem:[#allocation2 + $0x50] sm:$0xff]
    %v125 = vld [vmem:[#allocation2 + $0x58] sm:$0xff]
    %v126 = vld [vmem:[#allocation2 + $0x60] sm:$0xff]
    %v127 = vld [vmem:[#allocation2 + $0x68] sm:$0xff]
    %v128 = vld [vmem:[#allocation2 + $0x70] sm:$0xff]
    %v129 = vld [vmem:[#allocation2 + $0x78] sm:$0xff]
    %v130 = vld [vmem:[%s3] sm:$0x1]
    %v132 = vlaneseq
    %v133 = vshrl.u32 %v132, 7
    %v134 = vsub.s32 0, %v133
    %v135 = vrot.slane %v130, %v134
    %137 = vmatprep.subr.mxu0 0.0
    %138 = vmatpush1.msra.mxu0 %v114
    %139 = vmatprep.subr.mxu0 0.0
    %140 = vmatpush1.msra.mxu0 %v115
    %141 = vmatprep.subr.mxu0 0.0
    %142 = vmatpush1.msra.mxu0 %v116
    %143 = vmatprep.subr.mxu0 0.0
    %144 = vmatpush1.msra.mxu0 %v117
    %145 = vmatprep.subr.mxu0 0.0
    %146 = vmatpush1.msra.mxu0 %v118
    %147 = vmatprep.subr.mxu0 0.0
    %148 = vmatpush1.msra.mxu0 %v119
    %149 = vmatprep.subr.mxu0 0.0
    %150 = vmatpush1.msra.mxu0 %v120
    %151 = vmatprep.subr.mxu0 0.0
    %152 = vmatpush1.msra.mxu0 %v121
    %153 = vmatprep.subr.mxu0 0.0
    %154 = vmatpush1.msra.mxu0 %v122
    %155 = vmatprep.subr.mxu0 0.0
    %156 = vmatpush1.msra.mxu0 %v123
    %157 = vmatprep.subr.mxu0 0.0
    %158 = vmatpush1.msra.mxu0 %v124
    %159 = vmatprep.subr.mxu0 0.0
    %160 = vmatpush1.msra.mxu0 %v125
    %161 = vmatprep.subr.mxu0 0.0
    %162 = vmatpush1.msra.mxu0 %v126
    %163 = vmatprep.subr.mxu0 0.0
    %164 = vmatpush1.msra.mxu0 %v127
    %165 = vmatprep.subr.mxu0 0.0
    %166 = vmatpush1.msra.mxu0 %v128
    %167 = vmatprep.subr.mxu0 0.0
    %168 = vmatpush1.msra.mxu0 %v129
    %169 = vmatprep.subr.mxu0 0.0
    %170 = vmatpush1.msra.mxu0 0.0
    %171 = vmatprep.subr.mxu0 0.0
    %172 = vmatpush1.msra.mxu0 0.0
    %173 = vmatprep.subr.mxu0 0.0
    %174 = vmatpush1.msra.mxu0 0.0
    %175 = vmatprep.subr.mxu0 0.0
    %176 = vmatpush1.msra.mxu0 0.0
    %177 = vmatprep.subr.mxu0 0.0
    %178 = vmatpush1.msra.mxu0 0.0
    %179 = vmatprep.subr.mxu0 0.0
    %180 = vmatpush1.msra.mxu0 0.0
    %181 = vmatprep.subr.mxu0 0.0
    %182 = vmatpush1.msra.mxu0 0.0
    %183 = vmatprep.subr.mxu0 0.0
    %184 = vmatpush1.msra.mxu0 0.0
    %185 = vmatprep.subr.mxu0 0.0
    %186 = vmatpush1.msra.mxu0 0.0
    %187 = vmatprep.subr.mxu0 0.0
    %188 = vmatpush1.msra.mxu0 0.0
    %189 = vmatprep.subr.mxu0 0.0
    %190 = vmatpush1.msra.mxu0 0.0
    %191 = vmatprep.subr.mxu0 0.0
    %192 = vmatpush1.msra.mxu0 0.0
    %193 = vmatprep.subr.mxu0 0.0
    %194 = vmatpush1.msra.mxu0 0.0
    %195 = vmatprep.subr.mxu0 0.0
    %196 = vmatpush1.msra.mxu0 0.0
    %197 = vmatprep.subr.mxu0 0.0
    %198 = vmatpush1.msra.mxu0 0.0
    %199 = vmatprep.subr.mxu0 0.0
    %200 = vmatpush1.msra.mxu0 0.0
    %201 = vmatprep.mubr.f32.mxu0 0.0
    %202 = vmatmul.mubr.f32.gmra.mrb[0].mxu0 %v113
    %v203 = vpop.f32.mrb[0].mxu0
    %v204 = vadd.f32 %v135, %v203
    %v205 = vpop.f32.mrb[0].mxu0
    %206 = vdwg.mxu0
    %v207 = vld [vmem:[%s4] sm:$0x1]
    %v209 = vlaneseq
    %v210 = vshrl.u32 %v209, 7
    %v211 = vsub.s32 0, %v210
    %v212 = vrot.slane %v207, %v211
    %v214 = vadd.f32 %v204, %v212
    %215 = vmax.xlane.f32.xlu0 %v214
    %v216 = vpop.xlane.xlu0 %215
    %v217 = vsub.f32 %v214, %v216
    %v218 = vmul.f32 %v217, 1.442695
    %v219 = vpow.pop %v218
    %220 = vadd.xlane.f32.xlu0 %v219
    %v221 = vpop.xlane.xlu0 %220
    %v222 = vrcp.pop %v221
    %v223 = vmul.f32 %v219, %v222
    %v224 = vld [vmem:[%s5] sm:$0x1]
    %v226 = vlaneseq
    %v227 = vshrl.u32 %v226, 7
    %v228 = vsub.s32 0, %v227
    %v229 = vrot.slane %v224, %v228
    %v231 = vmul.f32 %v229, %v204
    %v232 = vadd.f32 %v223, %v231
    %233 = vst [vmem:[%s6] sm:$0xff] %v232
    // Predicated region
    $region30: #{policy_forward.1} parent=1 // pred_check
      _
    $region31: #{policy_forward.1} parent=1 // pred_check_branch
      %235 = sbr.rel (0) target = $region33
    $region32: #{policy_forward.1} parent=1 // pred_region
      _
    $region33: #{policy_forward.1} parent=1 // pred_fallthru
      _
    // Predicated region
    $region34: #{policy_forward.1} parent=1 // pred_check
      _
    $region35: #{policy_forward.1} parent=1 // pred_check_branch
      %237 = sbr.rel (0) target = $region37
    $region36: #{policy_forward.1} parent=1 // pred_region
      _
    $region37: #{policy_forward.1} parent=1 // pred_fallthru
      _
    %238 = vsyncpa [#allocation3], 1

</llo_original>
